<compile_context>
chip_gen: v6e
topology: v6e:2x2x1
jax: 0.10.0
libtpu: 0.0.40
codegen_flags: <defaults>
</compile_context>

<pallas_src>
import math
from functools import partial

import jax
import jax.numpy as jnp
from jax.experimental import pallas as pl
from jax.experimental.pallas import tpu as pltpu

NEG_INFTY = -1000000000.0


def _mha_kernel(q_ref, k_ref, v_ref,
                wq_ref, wk_ref, wv_ref, wc_ref,
                mask_ref,
                out_ref, attw_ref,
                acc_ref,
                *, d_depth):
    """One grid step = one (batch, q-tile, head). Head axis accumulates."""
    h = pl.program_id(2)

    @pl.when(h == 0)
    def _init():
        acc_ref[...] = jnp.zeros_like(acc_ref)

    scale = d_depth ** -0.5  # fold 1/sqrt(dk) into q once (tq*dh muls only)

    # Per-head projections; weights arrive already transposed & split per head
    # from the wrapper, so these are plain (tq,D)x(D,dh) MXU matmuls.
    qh = jnp.dot(q_ref[0], wq_ref[0], preferred_element_type=jnp.float32) * scale
    kh = jnp.dot(k_ref[0], wk_ref[0], preferred_element_type=jnp.float32)
    vh = jnp.dot(v_ref[0], wv_ref[0], preferred_element_type=jnp.float32)

    # q @ k^T without materializing a transpose: contract last dim of both.
    logits = jax.lax.dot_general(
        qh, kh, (((1,), (1,)), ((), ())),
        preferred_element_type=jnp.float32)            # (tq, Lk)
    logits = logits + mask_ref[...]                    # additive mask (shared)

    # softmax over keys (reciprocal goes to the EUP slot, mul stays on VPU)
    m = jnp.max(logits, axis=-1, keepdims=True)
    e = jnp.exp(logits - m)
    denom = jnp.sum(e, axis=-1, keepdims=True)
    w = e * pl.reciprocal(denom, approx=True)

    attw_ref[0, 0] = w.astype(attw_ref.dtype)

    # Head context + its contribution to the output projection (accumulate;
    # replaces combine_heads/concat + single big (L,D)x(D,D) at the end).
    ctx = jnp.dot(w.astype(vh.dtype), vh,
                  preferred_element_type=jnp.float32)              # (tq, dh)
    acc_ref[...] += jnp.dot(ctx.astype(wc_ref.dtype), wc_ref[0],
                            preferred_element_type=jnp.float32)    # (tq, D)

    @pl.when(h == pl.num_programs(2) - 1)
    def _finalize():
        out_ref[0] = acc_ref[...].astype(out_ref.dtype)


def _pick_block_q(lq, target=256):
    """Largest q-tile <= target that divides Lq and is a multiple of 8."""
    if lq <= target:
        return lq
    for cand in range(target - target % 8, 7, -8):
        if lq % cand == 0:
            return cand
    return lq


def multi_head_attention(v, k, q, wq, wk, wv, wc, n_heads, mask=None,
                         neg_infty=NEG_INFTY, *,
                         compute_dtype=None,
                         attn_weights_dtype=jnp.float32,
                         block_q=None):
    """Pallas implementation of MultiHeadAttention.forward(v, k, q, mask).

    Weights are in torch Linear layout (out_features, in_features); they are
    transposed and split per head once here (amortized over the whole grid).
    Set compute_dtype=jnp.bfloat16 on v6e/v7x for full-rate MXU matmuls
    (accumulation stays f32).
    """
    B, Lq, D = q.shape
    Lk = k.shape[1]
    assert D % n_heads == 0
    H = n_heads
    dh = D // n_heads

    out_dtype = q.dtype
    if compute_dtype is not None:
        q, k, v = (x.astype(compute_dtype) for x in (q, k, v))
        wq, wk, wv, wc = (w.astype(compute_dtype) for w in (wq, wk, wv, wc))

    # torch Linear: y = x @ W.T with W (out, in). Pre-transpose once and split
    # per head so the kernel never transposes or lane-slices.
    wq_h = jnp.transpose(wq.T.reshape(D, H, dh), (1, 0, 2))   # (H, D, dh)
    wk_h = jnp.transpose(wk.T.reshape(D, H, dh), (1, 0, 2))   # (H, D, dh)
    wv_h = jnp.transpose(wv.T.reshape(D, H, dh), (1, 0, 2))   # (H, D, dh)
    wc_h = wc.T.reshape(H, dh, D)                             # (H, dh, D)

    # Additive mask, shared across batch & heads (matches the torch module).
    # TODO(synk): per-batch / per-head masks would need their own grid-indexed
    # BlockSpec; the module only ever broadcasts a single (Lq, Lk) mask.
    if mask is None:
        attn_mask = jnp.zeros((Lq, Lk), jnp.float32)
    else:
        attn_mask = (jnp.asarray(mask, jnp.float32) * neg_infty).reshape(Lq, Lk)

    tq = block_q if block_q is not None else _pick_block_q(Lq)
    assert Lq % tq == 0
    n_q = Lq // tq

    kernel = partial(_mha_kernel, d_depth=dh)

    out, attw = pl.pallas_call(
        kernel,
        out_shape=(
            jax.ShapeDtypeStruct((B, Lq, D), out_dtype),
            jax.ShapeDtypeStruct((B, H, Lq, Lk), attn_weights_dtype),
        ),
        grid_spec=pltpu.PrefetchScalarGridSpec(
            num_scalar_prefetch=0,
            grid=(B, n_q, H),
            in_specs=[
                pl.BlockSpec((1, tq, D), lambda b, qi, h: (b, qi, 0)),    # q
                pl.BlockSpec((1, Lk, D), lambda b, qi, h: (b, 0, 0)),     # k
                pl.BlockSpec((1, Lk, D), lambda b, qi, h: (b, 0, 0)),     # v
                pl.BlockSpec((1, D, dh), lambda b, qi, h: (h, 0, 0)),     # wq_h
                pl.BlockSpec((1, D, dh), lambda b, qi, h: (h, 0, 0)),     # wk_h
                pl.BlockSpec((1, D, dh), lambda b, qi, h: (h, 0, 0)),     # wv_h
                pl.BlockSpec((1, dh, D), lambda b, qi, h: (h, 0, 0)),     # wc_h
                pl.BlockSpec((tq, Lk), lambda b, qi, h: (qi, 0)),         # mask
            ],
            out_specs=[
                pl.BlockSpec((1, tq, D), lambda b, qi, h: (b, qi, 0)),        # out
                pl.BlockSpec((1, 1, tq, Lk), lambda b, qi, h: (b, h, qi, 0)),  # attw
            ],
            scratch_shapes=[pltpu.VMEM((tq, D), jnp.float32)],
        ),
        compiler_params=pltpu.CompilerParams(
            dimension_semantics=("parallel", "parallel", "arbitrary"),
            vmem_limit_bytes=64 * 1024 * 1024),
    )(q, k, v, wq_h, wk_h, wv_h, wc_h, attn_mask)
    return out, attw


def _reference(v, k, q, wq, wk, wv, wc, n_heads, mask=None,
               neg_infty=NEG_INFTY):
    """Pure-JAX reference mirroring the PyTorch module."""
    B, Lq, D = q.shape
    Lk = k.shape[1]
    dh = D // n_heads

    def split_heads(x):
        return x.reshape(B, -1, n_heads, dh).transpose(0, 2, 1, 3)

    qh = split_heads(q @ wq.T)
    kh = split_heads(k @ wk.T)
    vh = split_heads(v @ wv.T)

    logits = jnp.einsum("bhqd,bhkd->bhqk", qh, kh) * (dh ** -0.5)
    if mask is None:
        attn_mask = jnp.zeros((1, 1, Lq, Lk), jnp.float32)
    else:
        attn_mask = (jnp.asarray(mask, jnp.float32) * neg_infty).reshape(1, 1, Lq, Lk)
    logits = logits + attn_mask
    w = jax.nn.softmax(logits, axis=3)
    o = jnp.einsum("bhqk,bhkd->bhqd", w, vh)
    o = o.transpose(0, 2, 1, 3).reshape(B, Lq, D)
    return o @ wc.T, w


if __name__ == "__main__":
    # Small, module-consistent shapes: batch=2, seq=8, d_model=32, n_heads=4
    B, L, d_model, n_heads = 2, 8, 32, 4

    key = jax.random.PRNGKey(0)
    kq, kk, kv, kwq, kwk, kwv, kwc = jax.random.split(key, 7)

    q = jax.random.normal(kq, (B, L, d_model), dtype=jnp.float32)
    k = jax.random.normal(kk, (B, L, d_model), dtype=jnp.float32)
    v = jax.random.normal(kv, (B, L, d_model), dtype=jnp.float32)

    # "torch Linear"-shaped weights: (out_features, in_features)
    wscale = 1.0 / math.sqrt(d_model)
    wq = jax.random.normal(kwq, (d_model, d_model), dtype=jnp.float32) * wscale
    wk = jax.random.normal(kwk, (d_model, d_model), dtype=jnp.float32) * wscale
    wv = jax.random.normal(kwv, (d_model, d_model), dtype=jnp.float32) * wscale
    wc = jax.random.normal(kwc, (d_model, d_model), dtype=jnp.float32) * wscale

    # causal mask (1 = masked), shared across batch/heads like the module
    causal_mask = jnp.triu(jnp.ones((L, L), jnp.float32), k=1)

    for m in (None, causal_mask):
        out, attw = multi_head_attention(v, k, q, wq, wk, wv, wc, n_heads, mask=m)
        out = jax.block_until_ready(out)
        attw = jax.block_until_ready(attw)

        ref_out, ref_w = _reference(v, k, q, wq, wk, wv, wc, n_heads, mask=m)
        assert out.shape == (B, L, d_model)
        assert attw.shape == (B, n_heads, L, L)
        # Tolerance accounts for the approximate EUP reciprocal in the softmax;
        # everything else is exact f32 (different summation order only).
        assert jnp.allclose(out, ref_out, rtol=1e-2, atol=1e-2)
        assert jnp.allclose(attw, ref_w, rtol=1e-2, atol=1e-2)

    print("KERNEL_OK")
</pallas_src>

<mosaic_0001>
module attributes {stable_mosaic.version = 11 : i64} {
  func.func @_mha_kernel(%arg0: i32, %arg1: i32, %arg2: i32, %arg3: memref<1x8x32xf32, #tpu.memory_space<vmem>>, %arg4: memref<1x8x32xf32, #tpu.memory_space<vmem>>, %arg5: memref<1x8x32xf32, #tpu.memory_space<vmem>>, %arg6: memref<1x32x8xf32, #tpu.memory_space<vmem>>, %arg7: memref<1x32x8xf32, #tpu.memory_space<vmem>>, %arg8: memref<1x32x8xf32, #tpu.memory_space<vmem>>, %arg9: memref<1x8x32xf32, #tpu.memory_space<vmem>>, %arg10: memref<8x8xf32, #tpu.memory_space<vmem>>, %arg11: memref<1x8x32xf32, #tpu.memory_space<vmem>>, %arg12: memref<1x1x8x8xf32, #tpu.memory_space<vmem>>, %arg13: memref<8x32xf32, #tpu.memory_space<vmem>>) attributes {dimension_semantics = [#tpu.dimension_semantics<parallel>, #tpu.dimension_semantics<parallel>, #tpu.dimension_semantics<arbitrary>], iteration_bounds = array<i64: 2, 1, 4>, scalar_prefetch = 0 : i64, scratch_operands = 1 : i64, tpu.core_type = #tpu.core_type<tc>, window_params = [{transform_indices = @transform_0, window_bounds = array<i64: 1, 8, 32>}, {transform_indices = @transform_1, window_bounds = array<i64: 1, 8, 32>}, {transform_indices = @transform_2, window_bounds = array<i64: 1, 8, 32>}, {transform_indices = @transform_3, window_bounds = array<i64: 1, 32, 8>}, {transform_indices = @transform_4, window_bounds = array<i64: 1, 32, 8>}, {transform_indices = @transform_5, window_bounds = array<i64: 1, 32, 8>}, {transform_indices = @transform_6, window_bounds = array<i64: 1, 8, 32>}, {transform_indices = @transform_7, window_bounds = array<i64: 8, 8>}, {transform_indices = @transform_8, window_bounds = array<i64: 1, 8, 32>}, {transform_indices = @transform_9, window_bounds = array<i64: 1, 1, 8, 8>}]} {
    %c0_i32 = arith.constant 0 : i32
    %0 = arith.cmpi eq, %arg2, %c0_i32 : i32
    %1 = arith.extui %0 : i1 to i32
    %c0_i32_0 = arith.constant 0 : i32
    %2 = arith.cmpi ne, %1, %c0_i32_0 : i32
    scf.if %2 {
      %cst_40 = arith.constant 0.000000e+00 : f32
      %46 = vector.broadcast %cst_40 : f32 to vector<8x32xf32>
      %c0_41 = arith.constant 0 : index
      %c0_42 = arith.constant 0 : index
      %47 = vector.load %arg13[%c0_41, %c0_42] : memref<8x32xf32, #tpu.memory_space<vmem>>, vector<8x32xf32>
      tpu.vector_store %arg13[%c0_41, %c0_42], %46 {strides = array<i32>} : memref<8x32xf32, #tpu.memory_space<vmem>>, vector<8x32xf32>,
    } else {
    }
    %c0 = arith.constant 0 : index
    %c0_1 = arith.constant 0 : index
    %c0_2 = arith.constant 0 : index
    %3 = vector.load %arg3[%c0, %c0_1, %c0_2] : memref<1x8x32xf32, #tpu.memory_space<vmem>>, vector<1x8x32xf32>
    %4 = vector.shape_cast %3 : vector<1x8x32xf32> to vector<8x32xf32>
    %c0_3 = arith.constant 0 : index
    %c0_4 = arith.constant 0 : index
    %c0_5 = arith.constant 0 : index
    %5 = vector.load %arg6[%c0_3, %c0_4, %c0_5] : memref<1x32x8xf32, #tpu.memory_space<vmem>>, vector<1x32x8xf32>
    %6 = vector.shape_cast %5 : vector<1x32x8xf32> to vector<32x8xf32>
    %cst = arith.constant dense<0.000000e+00> : vector<8x8xf32>
    %7 = tpu.matmul %4, %6, %cst {dimension_numbers = #tpu.dot_dimension_numbers<[1], [0], [0], [1], [0, 0, 1, 1], [], []>} : vector<8x32xf32>, vector<32x8xf32>, vector<8x8xf32> -> vector<8x8xf32>
    %cst_6 = arith.constant 0.353553385 : f32
    %8 = vector.broadcast %cst_6 : f32 to vector<8x8xf32>
    %9 = arith.mulf %7, %8 : vector<8x8xf32>
    %c0_7 = arith.constant 0 : index
    %c0_8 = arith.constant 0 : index
    %c0_9 = arith.constant 0 : index
    %10 = vector.load %arg4[%c0_7, %c0_8, %c0_9] : memref<1x8x32xf32, #tpu.memory_space<vmem>>, vector<1x8x32xf32>
    %11 = vector.shape_cast %10 : vector<1x8x32xf32> to vector<8x32xf32>
    %c0_10 = arith.constant 0 : index
    %c0_11 = arith.constant 0 : index
    %c0_12 = arith.constant 0 : index
    %12 = vector.load %arg7[%c0_10, %c0_11, %c0_12] : memref<1x32x8xf32, #tpu.memory_space<vmem>>, vector<1x32x8xf32>
    %13 = vector.shape_cast %12 : vector<1x32x8xf32> to vector<32x8xf32>
    %cst_13 = arith.constant dense<0.000000e+00> : vector<8x8xf32>
    %14 = tpu.matmul %11, %13, %cst_13 {dimension_numbers = #tpu.dot_dimension_numbers<[1], [0], [0], [1], [0, 0, 1, 1], [], []>} : vector<8x32xf32>, vector<32x8xf32>, vector<8x8xf32> -> vector<8x8xf32>
    %c0_14 = arith.constant 0 : index
    %c0_15 = arith.constant 0 : index
    %c0_16 = arith.constant 0 : index
    %15 = vector.load %arg5[%c0_14, %c0_15, %c0_16] : memref<1x8x32xf32, #tpu.memory_space<vmem>>, vector<1x8x32xf32>
    %16 = vector.shape_cast %15 : vector<1x8x32xf32> to vector<8x32xf32>
    %c0_17 = arith.constant 0 : index
    %c0_18 = arith.constant 0 : index
    %c0_19 = arith.constant 0 : index
    %17 = vector.load %arg8[%c0_17, %c0_18, %c0_19] : memref<1x32x8xf32, #tpu.memory_space<vmem>>, vector<1x32x8xf32>
    %18 = vector.shape_cast %17 : vector<1x32x8xf32> to vector<32x8xf32>
    %cst_20 = arith.constant dense<0.000000e+00> : vector<8x8xf32>
    %19 = tpu.matmul %16, %18, %cst_20 {dimension_numbers = #tpu.dot_dimension_numbers<[1], [0], [0], [1], [0, 0, 1, 1], [], []>} : vector<8x32xf32>, vector<32x8xf32>, vector<8x8xf32> -> vector<8x8xf32>
    %cst_21 = arith.constant dense<0.000000e+00> : vector<8x8xf32>
    %20 = tpu.matmul %9, %14, %cst_21 {dimension_numbers = #tpu.dot_dimension_numbers<[1], [1], [0], [0], [0, 0, 1, 0], [], []>} : vector<8x8xf32>, vector<8x8xf32>, vector<8x8xf32> -> vector<8x8xf32>
    %c0_22 = arith.constant 0 : index
    %c0_23 = arith.constant 0 : index
    %21 = vector.load %arg10[%c0_22, %c0_23] : memref<8x8xf32, #tpu.memory_space<vmem>>, vector<8x8xf32>
    %22 = arith.addf %20, %21 : vector<8x8xf32>
    %cst_24 = arith.constant dense<0xFF800000> : vector<8xf32>
    %23 = vector.multi_reduction <maximumf>, %22, %cst_24 [1] : vector<8x8xf32> to vector<8xf32>
    %24 = vector.shape_cast %23 : vector<8xf32> to vector<8x1xf32>
    %25 = vector.broadcast %24 : vector<8x1xf32> to vector<8x8xf32>
    %26 = arith.subf %22, %25 : vector<8x8xf32>
    %27 = math.exp %26 : vector<8x8xf32>
    %cst_25 = arith.constant dense<0.000000e+00> : vector<8xf32>
    %28 = vector.multi_reduction <add>, %27, %cst_25 [1] : vector<8x8xf32> to vector<8xf32>
    %29 = vector.shape_cast %28 : vector<8xf32> to vector<8x1xf32>
    %30 = tpu.reciprocal %29 {approx = true} : vector<8x1xf32> -> vector<8x1xf32>
    %31 = vector.broadcast %30 : vector<8x1xf32> to vector<8x8xf32>
    %32 = arith.mulf %27, %31 : vector<8x8xf32>
    %c0_26 = arith.constant 0 : index
    %c0_27 = arith.constant 0 : index
    %c0_28 = arith.constant 0 : index
    %c0_29 = arith.constant 0 : index
    %33 = vector.load %arg12[%c0_26, %c0_27, %c0_28, %c0_29] : memref<1x1x8x8xf32, #tpu.memory_space<vmem>>, vector<1x1x8x8xf32>
    %34 = vector.shape_cast %33 : vector<1x1x8x8xf32> to vector<8x8xf32>
    %35 = vector.shape_cast %32 : vector<8x8xf32> to vector<1x1x8x8xf32>
    tpu.vector_store %arg12[%c0_26, %c0_27, %c0_28, %c0_29], %35 {strides = array<i32>} : memref<1x1x8x8xf32, #tpu.memory_space<vmem>>, vector<1x1x8x8xf32>,
    %cst_30 = arith.constant dense<0.000000e+00> : vector<8x8xf32>
    %36 = tpu.matmul %32, %19, %cst_30 {dimension_numbers = #tpu.dot_dimension_numbers<[1], [0], [0], [1], [0, 0, 1, 1], [], []>} : vector<8x8xf32>, vector<8x8xf32>, vector<8x8xf32> -> vector<8x8xf32>
    %c0_31 = arith.constant 0 : index
    %c0_32 = arith.constant 0 : index
    %37 = vector.load %arg13[%c0_31, %c0_32] : memref<8x32xf32, #tpu.memory_space<vmem>>, vector<8x32xf32>
    %c0_33 = arith.constant 0 : index
    %c0_34 = arith.constant 0 : index
    %c0_35 = arith.constant 0 : index
    %38 = vector.load %arg9[%c0_33, %c0_34, %c0_35] : memref<1x8x32xf32, #tpu.memory_space<vmem>>, vector<1x8x32xf32>
    %39 = vector.shape_cast %38 : vector<1x8x32xf32> to vector<8x32xf32>
    %cst_36 = arith.constant dense<0.000000e+00> : vector<8x32xf32>
    %40 = tpu.matmul %36, %39, %cst_36 {dimension_numbers = #tpu.dot_dimension_numbers<[1], [0], [0], [1], [0, 0, 1, 1], [], []>} : vector<8x8xf32>, vector<8x32xf32>, vector<8x32xf32> -> vector<8x32xf32>
    %41 = arith.addf %37, %40 : vector<8x32xf32>
    %c0_37 = arith.constant 0 : index
    %c0_38 = arith.constant 0 : index
    %42 = vector.load %arg13[%c0_37, %c0_38] : memref<8x32xf32, #tpu.memory_space<vmem>>, vector<8x32xf32>
    tpu.vector_store %arg13[%c0_37, %c0_38], %41 {strides = array<i32>} : memref<8x32xf32, #tpu.memory_space<vmem>>, vector<8x32xf32>,
    %c3_i32 = arith.constant 3 : i32
    %43 = arith.cmpi eq, %arg2, %c3_i32 : i32
    %44 = arith.extui %43 : i1 to i32
    %c0_i32_39 = arith.constant 0 : i32
    %45 = arith.cmpi ne, %44, %c0_i32_39 : i32
    scf.if %45 {
      %c0_40 = arith.constant 0 : index
      %c0_41 = arith.constant 0 : index
      %46 = vector.load %arg13[%c0_40, %c0_41] : memref<8x32xf32, #tpu.memory_space<vmem>>, vector<8x32xf32>
      %c0_42 = arith.constant 0 : index
      %c0_43 = arith.constant 0 : index
      %c0_44 = arith.constant 0 : index
      %47 = vector.load %arg11[%c0_42, %c0_43, %c0_44] : memref<1x8x32xf32, #tpu.memory_space<vmem>>, vector<1x8x32xf32>
      %48 = vector.shape_cast %47 : vector<1x8x32xf32> to vector<8x32xf32>
      %49 = vector.shape_cast %46 : vector<8x32xf32> to vector<1x8x32xf32>
      tpu.vector_store %arg11[%c0_42, %c0_43, %c0_44], %49 {strides = array<i32>} : memref<1x8x32xf32, #tpu.memory_space<vmem>>, vector<1x8x32xf32>,
    } else {
    }
    return
  }
  func.func @transform_0(%arg0: i32, %arg1: i32, %arg2: i32) -> (i32, i32, i32) {
    %c0_i32 = arith.constant 0 : i32
    %c0_i32_0 = arith.constant 0 : i32
    return %arg0, %arg1, %c0_i32 : i32, i32, i32
  }
  func.func @transform_1(%arg0: i32, %arg1: i32, %arg2: i32) -> (i32, i32, i32) {
    %c0_i32 = arith.constant 0 : i32
    %c0_i32_0 = arith.constant 0 : i32
    %c0_i32_1 = arith.constant 0 : i32
    return %arg0, %c0_i32, %c0_i32_0 : i32, i32, i32
  }
  func.func @transform_2(%arg0: i32, %arg1: i32, %arg2: i32) -> (i32, i32, i32) {
    %c0_i32 = arith.constant 0 : i32
    %c0_i32_0 = arith.constant 0 : i32
    %c0_i32_1 = arith.constant 0 : i32
    return %arg0, %c0_i32, %c0_i32_0 : i32, i32, i32
  }
  func.func @transform_3(%arg0: i32, %arg1: i32, %arg2: i32) -> (i32, i32, i32) {
    %c0_i32 = arith.constant 0 : i32
    %c0_i32_0 = arith.constant 0 : i32
    %c0_i32_1 = arith.constant 0 : i32
    return %arg2, %c0_i32, %c0_i32_0 : i32, i32, i32
  }
  func.func @transform_4(%arg0: i32, %arg1: i32, %arg2: i32) -> (i32, i32, i32) {
    %c0_i32 = arith.constant 0 : i32
    %c0_i32_0 = arith.constant 0 : i32
    %c0_i32_1 = arith.constant 0 : i32
    return %arg2, %c0_i32, %c0_i32_0 : i32, i32, i32
  }
  func.func @transform_5(%arg0: i32, %arg1: i32, %arg2: i32) -> (i32, i32, i32) {
    %c0_i32 = arith.constant 0 : i32
    %c0_i32_0 = arith.constant 0 : i32
    %c0_i32_1 = arith.constant 0 : i32
    return %arg2, %c0_i32, %c0_i32_0 : i32, i32, i32
  }
  func.func @transform_6(%arg0: i32, %arg1: i32, %arg2: i32) -> (i32, i32, i32) {
    %c0_i32 = arith.constant 0 : i32
    %c0_i32_0 = arith.constant 0 : i32
    %c0_i32_1 = arith.constant 0 : i32
    return %arg2, %c0_i32, %c0_i32_0 : i32, i32, i32
  }
  func.func @transform_7(%arg0: i32, %arg1: i32, %arg2: i32) -> (i32, i32) {
    %c0_i32 = arith.constant 0 : i32
    %c0_i32_0 = arith.constant 0 : i32
    return %arg1, %c0_i32 : i32, i32
  }
  func.func @transform_8(%arg0: i32, %arg1: i32, %arg2: i32) -> (i32, i32, i32) {
    %c0_i32 = arith.constant 0 : i32
    %c0_i32_0 = arith.constant 0 : i32
    return %arg0, %arg1, %c0_i32 : i32, i32, i32
  }
  func.func @transform_9(%arg0: i32, %arg1: i32, %arg2: i32) -> (i32, i32, i32, i32) {
    %c0_i32 = arith.constant 0 : i32
    %c0_i32_0 = arith.constant 0 : i32
    return %arg0, %arg2, %arg1, %c0_i32 : i32, i32, i32, i32
  }
}

</mosaic_0001>

<llo_original>
// kernel: tpu_custom_call.1
$region0: #{tpu_custom_call.1}
  #allocation0 [shape = 'u32[]', space=smem, size = 0x4, offset = 0x4, fixed_abs, tag = 'smem constant byte address 0x4 - core index']
  #allocation1 [shape = 'u32[144,128]{1,0:T(1,128)}', space=vmem, size = 0x12000, scoped, tag = 'internal scratch']
  #allocation2 [shape = 'f32[8,32]{1,0:T(8,128)}', space=vmem, size = 0x1000, scoped, tag = 'scratch operand']
  %s0 = inlined_call_operand.vmem [shape: f32[2,8,32], index: 0, kind: input, shape index: {}]
  %s1 = inlined_call_operand.vmem [shape: f32[2,8,32], index: 1, kind: input, shape index: {}]
  %s2 = inlined_call_operand.vmem [shape: f32[2,8,32], index: 2, kind: input, shape index: {}]
  %s3 = inlined_call_operand.vmem [shape: f32[4,32,8], index: 3, kind: input, shape index: {}]
  %s4 = inlined_call_operand.vmem [shape: f32[4,32,8], index: 4, kind: input, shape index: {}]
  %s5 = inlined_call_operand.vmem [shape: f32[4,32,8], index: 5, kind: input, shape index: {}]
  %s6 = inlined_call_operand.vmem [shape: f32[4,8,32], index: 6, kind: input, shape index: {}]
  %s7 = inlined_call_operand.vmem [shape: f32[8,8], index: 7, kind: input, shape index: {}]
  %s8 = inlined_call_operand.hbm [shape: f32[2,8,32], index: 8, kind: output, shape index: {0}]
  %s9 = inlined_call_operand.hbm [shape: f32[2,4,8,8], index: 9, kind: output, shape index: {1}]
  %10 = xla_tuple %s8, %s9
  %s11 = sld [smem:[#allocation0]]
  $region81: #{tpu_custom_call.1} parent=0
    _
  %s13 = ssub.s32 1, %s11
  %s14 = scalar_select 0, %s13, %s11
  $region1: #{tpu_custom_call.1} parent=0
    #allocation3 [shape = 'u8[8192]{0}', space=vmem, size = 0x2000, scoped, tag = 'output window, operand 0']
    #allocation4 [shape = 's32[2]{0}', space=sflag, size = 0x8, scoped, tag = 'scoped memory for tpu_custom_call.1']
    #allocation5 [shape = 'u8[8192]{0}', space=vmem, size = 0x2000, scoped, tag = 'output window, operand 1']
    #allocation6 [shape = 's32[2]{0}', space=sflag, size = 0x8, scoped, tag = 'scoped memory for tpu_custom_call.1']
    %15 = vsyncpa [#allocation4], 0
    %s16 = scalar_lea.sflag [#allocation4], 1
    %17 = vsyncpa %s16, 0
    %18 = vsyncpa [#allocation6], 0
    %s19 = scalar_lea.sflag [#allocation6], 1
    %20 = vsyncpa %s19, 0
    loop: start=0, step=1, limit=10
    $region2: #{tpu_custom_call.1} parent=1 // loop_pre_header
      _
    $region3: #{tpu_custom_call.1} parent=1 // loop_header
      %s22 = sphi 0, %s26
      %p23 = scmp.ge.s32.totalorder %s22, 10
      %s29 = sphi 0, %s48
      %s30 = sphi 0, %s44
      %s31 = sphi 0, %s40
      %s32 = sphi 0, %s29
      %s33 = sphi 0, %s30
      %s34 = sphi 0, %s31
      %s35 = sphi 0, %s32
      %s36 = sphi 0, %s33
      %s37 = sphi 0, %s34
      %s53 = sphi 0, %s55
      %s56 = sphi 0, %s53
      %s57 = sphi 0, %s56
      %s73 = sphi 0, %s57
      %s79 = sphi 0, %s81
      %s82 = sphi 0, %s79
      %s83 = sphi 0, %s82
      %s99 = sphi 0, %s83
      %s105 = sphi 0, %s107
      %s108 = sphi 0, %s105
      %s109 = sphi 0, %s108
      %s125 = sphi 0, %s109
      %s131 = sphi 0, %s133
      %s134 = sphi 0, %s131
      %s135 = sphi 0, %s134
      %s151 = sphi 0, %s135
      %s157 = sphi 0, %s159
      %s160 = sphi 0, %s157
      %s161 = sphi 0, %s160
      %s177 = sphi 0, %s161
      %s183 = sphi 0, %s185
      %s186 = sphi 0, %s183
      %s187 = sphi 0, %s186
      %s203 = sphi 0, %s187
      %s209 = sphi 0, %s211
      %s212 = sphi 0, %s209
      %s213 = sphi 0, %s212
      %s229 = sphi 0, %s213
      %s235 = sphi 0, %s237
      %s238 = sphi 0, %s235
      %s239 = sphi 0, %s238
      %s255 = sphi 0, %s239
      %s263 = sphi 0, %s265
      %s266 = sphi 0, %s263
      %s267 = sphi 0, %s266
      %s283 = sphi 0, %s267
      %s293 = sphi 0, %s295
      %s296 = sphi 0, %s293
      %s297 = sphi 0, %s296
      %s313 = sphi 0, %s297
    $region4: #{tpu_custom_call.1} parent=1 // loop_header_branch
      %25 = sbr.rel (%p23) target = $region8
    $region5: #{tpu_custom_call.1} parent=1 // loop_body
      %s27 = ssub.s32 %s22, 1
      %s28 = ssub.s32 %s22, 2
      %s38 = sadd.s32 1, %s31
      %p39 = scmp.ge.s32.totalorder %s38, 4
      %s40 = scalar_select %p39, 0, %s38
      %s41 = sadd.s32 1, %s30
      %s42 = scalar_select %p39, %s41, %s30
      %p43 = scmp.ge.s32.totalorder %s42, 1
      %s44 = scalar_select %p43, 0, %s42
      %s45 = sadd.s32 1, %s29
      %s46 = scalar_select %p43, %s45, %s29
      %p47 = scmp.ge.s32.totalorder %s46, 2
      %s48 = scalar_select %p47, 0, %s46
      %s49 = ssub.s32 %s29, %s48
      %s50 = ssub.s32 %s30, %s44
      %s51 = sor.u32 %s49, %s50
      %p52 = scmp.eq.s32.totalorder %s51, 0
      %s54 = sadd.s32 %s53, 1
      %s55 = scalar_select %p52, %s53, %s54
      %p58 = pneg %p52
      %p59 = scmp.eq.s32.totalorder %s22, 7
      %p60 = por %p58, %p59
      %p61 = scmp.ne.s32.totalorder %s53, %s56
      %p62 = scmp.eq.s32.totalorder %s22, 0
      %p63 = por %p61, %p62
      %p64 = scmp.ne.s32.totalorder %s53, %s56
      %p65 = scmp.eq.s32.totalorder %s27, 7
      %p66 = por %p64, %p65
      %p67 = scmp.ne.s32.totalorder %s56, %s57
      %p68 = scmp.eq.s32.totalorder %s27, 0
      %p69 = por %p67, %p68
      %p70 = scmp.ne.s32.totalorder %s56, %s57
      %p71 = scmp.eq.s32.totalorder %s28, 7
      %p72 = por %p70, %p71
      %p74 = scmp.ne.s32.totalorder %s57, %s73
      %p75 = scmp.eq.s32.totalorder %s28, 0
      %p76 = por %p74, %p75
      %s77 = ssub.s32 %s29, %s48
      %p78 = scmp.eq.s32.totalorder %s77, 0
      %s80 = sadd.s32 %s79, 1
      %s81 = scalar_select %p78, %s79, %s80
      %p84 = pneg %p78
      %p85 = scmp.eq.s32.totalorder %s22, 7
      %p86 = por %p84, %p85
      %p87 = scmp.ne.s32.totalorder %s79, %s82
      %p88 = scmp.eq.s32.totalorder %s22, 0
      %p89 = por %p87, %p88
      %p90 = scmp.ne.s32.totalorder %s79, %s82
      %p91 = scmp.eq.s32.totalorder %s27, 7
      %p92 = por %p90, %p91
      %p93 = scmp.ne.s32.totalorder %s82, %s83
      %p94 = scmp.eq.s32.totalorder %s27, 0
      %p95 = por %p93, %p94
      %p96 = scmp.ne.s32.totalorder %s82, %s83
      %p97 = scmp.eq.s32.totalorder %s28, 7
      %p98 = por %p96, %p97
      %p100 = scmp.ne.s32.totalorder %s83, %s99
      %p101 = scmp.eq.s32.totalorder %s28, 0
      %p102 = por %p100, %p101
      %s103 = ssub.s32 %s29, %s48
      %p104 = scmp.eq.s32.totalorder %s103, 0
      %s106 = sadd.s32 %s105, 1
      %s107 = scalar_select %p104, %s105, %s106
      %p110 = pneg %p104
      %p111 = scmp.eq.s32.totalorder %s22, 7
      %p112 = por %p110, %p111
      %p113 = scmp.ne.s32.totalorder %s105, %s108
      %p114 = scmp.eq.s32.totalorder %s22, 0
      %p115 = por %p113, %p114
      %p116 = scmp.ne.s32.totalorder %s105, %s108
      %p117 = scmp.eq.s32.totalorder %s27, 7
      %p118 = por %p116, %p117
      %p119 = scmp.ne.s32.totalorder %s108, %s109
      %p120 = scmp.eq.s32.totalorder %s27, 0
      %p121 = por %p119, %p120
      %p122 = scmp.ne.s32.totalorder %s108, %s109
      %p123 = scmp.eq.s32.totalorder %s28, 7
      %p124 = por %p122, %p123
      %p126 = scmp.ne.s32.totalorder %s109, %s125
      %p127 = scmp.eq.s32.totalorder %s28, 0
      %p128 = por %p126, %p127
      %s129 = ssub.s32 %s31, %s40
      %p130 = scmp.eq.s32.totalorder %s129, 0
      %s132 = sadd.s32 %s131, 1
      %s133 = scalar_select %p130, %s131, %s132
      %p136 = pneg %p130
      %p137 = scmp.eq.s32.totalorder %s22, 7
      %p138 = por %p136, %p137
      %p139 = scmp.ne.s32.totalorder %s131, %s134
      %p140 = scmp.eq.s32.totalorder %s22, 0
      %p141 = por %p139, %p140
      %p142 = scmp.ne.s32.totalorder %s131, %s134
      %p143 = scmp.eq.s32.totalorder %s27, 7
      %p144 = por %p142, %p143
      %p145 = scmp.ne.s32.totalorder %s134, %s135
      %p146 = scmp.eq.s32.totalorder %s27, 0
      %p147 = por %p145, %p146
      %p148 = scmp.ne.s32.totalorder %s134, %s135
      %p149 = scmp.eq.s32.totalorder %s28, 7
      %p150 = por %p148, %p149
      %p152 = scmp.ne.s32.totalorder %s135, %s151
      %p153 = scmp.eq.s32.totalorder %s28, 0
      %p154 = por %p152, %p153
      %s155 = ssub.s32 %s31, %s40
      %p156 = scmp.eq.s32.totalorder %s155, 0
      %s158 = sadd.s32 %s157, 1
      %s159 = scalar_select %p156, %s157, %s158
      %p162 = pneg %p156
      %p163 = scmp.eq.s32.totalorder %s22, 7
      %p164 = por %p162, %p163
      %p165 = scmp.ne.s32.totalorder %s157, %s160
      %p166 = scmp.eq.s32.totalorder %s22, 0
      %p167 = por %p165, %p166
      %p168 = scmp.ne.s32.totalorder %s157, %s160
      %p169 = scmp.eq.s32.totalorder %s27, 7
      %p170 = por %p168, %p169
      %p171 = scmp.ne.s32.totalorder %s160, %s161
      %p172 = scmp.eq.s32.totalorder %s27, 0
      %p173 = por %p171, %p172
      %p174 = scmp.ne.s32.totalorder %s160, %s161
      %p175 = scmp.eq.s32.totalorder %s28, 7
      %p176 = por %p174, %p175
      %p178 = scmp.ne.s32.totalorder %s161, %s177
      %p179 = scmp.eq.s32.totalorder %s28, 0
      %p180 = por %p178, %p179
      %s181 = ssub.s32 %s31, %s40
      %p182 = scmp.eq.s32.totalorder %s181, 0
      %s184 = sadd.s32 %s183, 1
      %s185 = scalar_select %p182, %s183, %s184
      %p188 = pneg %p182
      %p189 = scmp.eq.s32.totalorder %s22, 7
      %p190 = por %p188, %p189
      %p191 = scmp.ne.s32.totalorder %s183, %s186
      %p192 = scmp.eq.s32.totalorder %s22, 0
      %p193 = por %p191, %p192
      %p194 = scmp.ne.s32.totalorder %s183, %s186
      %p195 = scmp.eq.s32.totalorder %s27, 7
      %p196 = por %p194, %p195
      %p197 = scmp.ne.s32.totalorder %s186, %s187
      %p198 = scmp.eq.s32.totalorder %s27, 0
      %p199 = por %p197, %p198
      %p200 = scmp.ne.s32.totalorder %s186, %s187
      %p201 = scmp.eq.s32.totalorder %s28, 7
      %p202 = por %p200, %p201
      %p204 = scmp.ne.s32.totalorder %s187, %s203
      %p205 = scmp.eq.s32.totalorder %s28, 0
      %p206 = por %p204, %p205
      %s207 = ssub.s32 %s31, %s40
      %p208 = scmp.eq.s32.totalorder %s207, 0
      %s210 = sadd.s32 %s209, 1
      %s211 = scalar_select %p208, %s209, %s210
      %p214 = pneg %p208
      %p215 = scmp.eq.s32.totalorder %s22, 7
      %p216 = por %p214, %p215
      %p217 = scmp.ne.s32.totalorder %s209, %s212
      %p218 = scmp.eq.s32.totalorder %s22, 0
      %p219 = por %p217, %p218
      %p220 = scmp.ne.s32.totalorder %s209, %s212
      %p221 = scmp.eq.s32.totalorder %s27, 7
      %p222 = por %p220, %p221
      %p223 = scmp.ne.s32.totalorder %s212, %s213
      %p224 = scmp.eq.s32.totalorder %s27, 0
      %p225 = por %p223, %p224
      %p226 = scmp.ne.s32.totalorder %s212, %s213
      %p227 = scmp.eq.s32.totalorder %s28, 7
      %p228 = por %p226, %p227
      %p230 = scmp.ne.s32.totalorder %s213, %s229
      %p231 = scmp.eq.s32.totalorder %s28, 0
      %p232 = por %p230, %p231
      %s233 = ssub.s32 %s30, %s44
      %p234 = scmp.eq.s32.totalorder %s233, 0
      %s236 = sadd.s32 %s235, 1
      %s237 = scalar_select %p234, %s235, %s236
      %p240 = pneg %p234
      %p241 = scmp.eq.s32.totalorder %s22, 7
      %p242 = por %p240, %p241
      %p243 = scmp.ne.s32.totalorder %s235, %s238
      %p244 = scmp.eq.s32.totalorder %s22, 0
      %p245 = por %p243, %p244
      %p246 = scmp.ne.s32.totalorder %s235, %s238
      %p247 = scmp.eq.s32.totalorder %s27, 7
      %p248 = por %p246, %p247
      %p249 = scmp.ne.s32.totalorder %s238, %s239
      %p250 = scmp.eq.s32.totalorder %s27, 0
      %p251 = por %p249, %p250
      %p252 = scmp.ne.s32.totalorder %s238, %s239
      %p253 = scmp.eq.s32.totalorder %s28, 7
      %p254 = por %p252, %p253
      %p256 = scmp.ne.s32.totalorder %s239, %s255
      %p257 = scmp.eq.s32.totalorder %s28, 0
      %p258 = por %p256, %p257
      %s259 = ssub.s32 %s29, %s48
      %s260 = ssub.s32 %s30, %s44
      %s261 = sor.u32 %s259, %s260
      %p262 = scmp.eq.s32.totalorder %s261, 0
      %s264 = sadd.s32 %s263, 1
      %s265 = scalar_select %p262, %s263, %s264
      %p268 = pneg %p262
      %p269 = scmp.eq.s32.totalorder %s22, 7
      %p270 = por %p268, %p269
      %p271 = scmp.ne.s32.totalorder %s263, %s266
      %p272 = scmp.eq.s32.totalorder %s22, 0
      %p273 = por %p271, %p272
      %p274 = scmp.ne.s32.totalorder %s263, %s266
      %p275 = scmp.eq.s32.totalorder %s27, 7
      %p276 = por %p274, %p275
      %p277 = scmp.ne.s32.totalorder %s266, %s267
      %p278 = scmp.eq.s32.totalorder %s27, 0
      %p279 = por %p277, %p278
      %p280 = scmp.ne.s32.totalorder %s266, %s267
      %p281 = scmp.eq.s32.totalorder %s28, 7
      %p282 = por %p280, %p281
      %p284 = scmp.ne.s32.totalorder %s267, %s283
      %p285 = scmp.eq.s32.totalorder %s28, 0
      %p286 = por %p284, %p285
      %s287 = ssub.s32 %s29, %s48
      %s288 = ssub.s32 %s31, %s40
      %s289 = sor.u32 %s287, %s288
      %s290 = ssub.s32 %s30, %s44
      %s291 = sor.u32 %s289, %s290
      %p292 = scmp.eq.s32.totalorder %s291, 0
      %s294 = sadd.s32 %s293, 1
      %s295 = scalar_select %p292, %s293, %s294
      %p298 = pneg %p292
      %p299 = scmp.eq.s32.totalorder %s22, 7
      %p300 = por %p298, %p299
      %p301 = scmp.ne.s32.totalorder %s293, %s296
      %p302 = scmp.eq.s32.totalorder %s22, 0
      %p303 = por %p301, %p302
      %p304 = scmp.ne.s32.totalorder %s293, %s296
      %p305 = scmp.eq.s32.totalorder %s27, 7
      %p306 = por %p304, %p305
      %p307 = scmp.ne.s32.totalorder %s296, %s297
      %p308 = scmp.eq.s32.totalorder %s27, 0
      %p309 = por %p307, %p308
      %p310 = scmp.ne.s32.totalorder %s296, %s297
      %p311 = scmp.eq.s32.totalorder %s28, 7
      %p312 = por %p310, %p311
      %p314 = scmp.ne.s32.totalorder %s297, %s313
      %p315 = scmp.eq.s32.totalorder %s28, 0
      %p316 = por %p314, %p315
      %p317 = scmp.le.s32.totalorder 1, %s22
      %p318 = scmp.lt.s32.totalorder %s22, 9
      %p319 = pnand %p317, %p318
      %p320 = pneg %p319
      // Predicated region
      $region9: #{tpu_custom_call.1} parent=5 // pred_check
        _
      $region10: #{tpu_custom_call.1} parent=5 // pred_check_branch
        %322 = sbr.rel (%p319) target = $region12
      $region11: #{tpu_custom_call.1} parent=5 // pred_region
        %s323 = ssub.s32 %s22, 1
        // Predicated region
        $region13: #{tpu_custom_call.1} parent=11 // pred_check
          %p324 = pneg %p251
        $region14: #{tpu_custom_call.1} parent=11 // pred_check_branch
          %326 = sbr.rel (%p324) target = $region16
        $region15: #{tpu_custom_call.1} parent=11 // pred_region
          %p327 = scmp.lt.s32.totalorder %s33, 0
          %s328 = scalar_select %p327, %s33, 0
          %s329 = smul.addr %s328, 8
          %s330 = scalar_lea.vmem %s7, %s329
        $region16: #{tpu_custom_call.1} parent=11 // pred_fallthru
          _
      $region12: #{tpu_custom_call.1} parent=5 // pred_fallthru
        _
      %p331 = scmp.lt.s32.totalorder %s22, 8
      // Predicated region
      $region17: #{tpu_custom_call.1} parent=5 // pred_check
        %p332 = pneg %p331
      $region18: #{tpu_custom_call.1} parent=5 // pred_check_branch
        %334 = sbr.rel (%p332) target = $region20
      $region19: #{tpu_custom_call.1} parent=5 // pred_region
        // Predicated region
        $region21: #{tpu_custom_call.1} parent=19 // pred_check
          %p335 = pneg %p63
        $region22: #{tpu_custom_call.1} parent=19 // pred_check_branch
          %337 = sbr.rel (%p335) target = $region24
        $region23: #{tpu_custom_call.1} parent=19 // pred_region
          %p338 = scmp.lt.s32.totalorder %s29, 1
          %s339 = scalar_select %p338, %s29, 1
          %p340 = scmp.lt.s32.totalorder %s30, 0
          %s341 = scalar_select %p340, %s30, 0
          %s342 = sadd.s32 %s341, %s339
          %s343 = smul.addr %s342, 8
          %s344 = scalar_lea.vmem %s0, %s343
        $region24: #{tpu_custom_call.1} parent=19 // pred_fallthru
          _
        // Predicated region
        $region25: #{tpu_custom_call.1} parent=19 // pred_check
          %p345 = pneg %p89
        $region26: #{tpu_custom_call.1} parent=19 // pred_check_branch
          %347 = sbr.rel (%p345) target = $region28
        $region27: #{tpu_custom_call.1} parent=19 // pred_region
          %p348 = scmp.lt.s32.totalorder %s29, 1
          %s349 = scalar_select %p348, %s29, 1
          %s350 = smul.addr %s349, 8
          %s351 = scalar_lea.vmem %s1, %s350
        $region28: #{tpu_custom_call.1} parent=19 // pred_fallthru
          _
        // Predicated region
        $region29: #{tpu_custom_call.1} parent=19 // pred_check
          %p352 = pneg %p115
        $region30: #{tpu_custom_call.1} parent=19 // pred_check_branch
          %354 = sbr.rel (%p352) target = $region32
        $region31: #{tpu_custom_call.1} parent=19 // pred_region
          %p355 = scmp.lt.s32.totalorder %s29, 1
          %s356 = scalar_select %p355, %s29, 1
          %s357 = smul.addr %s356, 8
          %s358 = scalar_lea.vmem %s2, %s357
        $region32: #{tpu_custom_call.1} parent=19 // pred_fallthru
          _
        // Predicated region
        $region33: #{tpu_custom_call.1} parent=19 // pred_check
          %p359 = pneg %p141
        $region34: #{tpu_custom_call.1} parent=19 // pred_check_branch
          %361 = sbr.rel (%p359) target = $region36
        $region35: #{tpu_custom_call.1} parent=19 // pred_region
          %p362 = scmp.lt.s32.totalorder %s31, 3
          %s363 = scalar_select %p362, %s31, 3
          %s364 = smul.addr %s363, 4
          %s365 = smul.addr %s364, 8
          %s366 = scalar_lea.vmem %s3, %s365
        $region36: #{tpu_custom_call.1} parent=19 // pred_fallthru
          _
        // Predicated region
        $region37: #{tpu_custom_call.1} parent=19 // pred_check
          %p367 = pneg %p167
        $region38: #{tpu_custom_call.1} parent=19 // pred_check_branch
          %369 = sbr.rel (%p367) target = $region40
        $region39: #{tpu_custom_call.1} parent=19 // pred_region
          %p370 = scmp.lt.s32.totalorder %s31, 3
          %s371 = scalar_select %p370, %s31, 3
          %s372 = smul.addr %s371, 4
          %s373 = smul.addr %s372, 8
          %s374 = scalar_lea.vmem %s4, %s373
        $region40: #{tpu_custom_call.1} parent=19 // pred_fallthru
          _
        // Predicated region
        $region41: #{tpu_custom_call.1} parent=19 // pred_check
          %p375 = pneg %p193
        $region42: #{tpu_custom_call.1} parent=19 // pred_check_branch
          %377 = sbr.rel (%p375) target = $region44
        $region43: #{tpu_custom_call.1} parent=19 // pred_region
          %p378 = scmp.lt.s32.totalorder %s31, 3
          %s379 = scalar_select %p378, %s31, 3
          %s380 = smul.addr %s379, 4
          %s381 = smul.addr %s380, 8
          %s382 = scalar_lea.vmem %s5, %s381
        $region44: #{tpu_custom_call.1} parent=19 // pred_fallthru
          _
        // Predicated region
        $region45: #{tpu_custom_call.1} parent=19 // pred_check
          %p383 = pneg %p219
        $region46: #{tpu_custom_call.1} parent=19 // pred_check_branch
          %385 = sbr.rel (%p383) target = $region48
        $region47: #{tpu_custom_call.1} parent=19 // pred_region
          %p386 = scmp.lt.s32.totalorder %s31, 3
          %s387 = scalar_select %p386, %s31, 3
          %s388 = smul.addr %s387, 8
          %s389 = scalar_lea.vmem %s6, %s388
        $region48: #{tpu_custom_call.1} parent=19 // pred_fallthru
          _
      $region20: #{tpu_custom_call.1} parent=5 // pred_fallthru
        _
      %p390 = scmp.le.s32.totalorder 1, %s22
      %p391 = scmp.lt.s32.totalorder %s22, 9
      %p392 = pnand %p390, %p391
      %p393 = pneg %p392
      // Predicated region
      $region49: #{tpu_custom_call.1} parent=5 // pred_check
        _
      $region50: #{tpu_custom_call.1} parent=5 // pred_check_branch
        %395 = sbr.rel (%p392) target = $region52
      $region51: #{tpu_custom_call.1} parent=5 // pred_region
        %s396 = ssub.s32 %s22, 1
        %p397 = scmp.lt.s32.totalorder %s32, 1
        %s398 = scalar_select %p397, %s32, 1
        %p399 = scmp.lt.s32.totalorder %s33, 0
        %s400 = scalar_select %p399, %s33, 0
        %s401 = sadd.s32 %s400, %s398
        %s402 = smul.addr %s401, 8
        %s403 = scalar_lea.vmem %s0, %s402
        %p404 = pneg %p69
        %p405 = pneg %p66
        %p406 = scmp.lt.s32.totalorder %s32, 1
        %s407 = scalar_select %p406, %s32, 1
        %s408 = smul.addr %s407, 8
        %s409 = scalar_lea.vmem %s1, %s408
        %p410 = pneg %p95
        %p411 = pneg %p92
        %p412 = scmp.lt.s32.totalorder %s32, 1
        %s413 = scalar_select %p412, %s32, 1
        %s414 = smul.addr %s413, 8
        %s415 = scalar_lea.vmem %s2, %s414
        %p416 = pneg %p121
        %p417 = pneg %p118
        %p418 = scmp.lt.s32.totalorder %s34, 3
        %s419 = scalar_select %p418, %s34, 3
        %s420 = smul.addr %s419, 4
        %s421 = smul.addr %s420, 8
        %s422 = scalar_lea.vmem %s3, %s421
        %p423 = pneg %p147
        %p424 = pneg %p144
        %p425 = scmp.lt.s32.totalorder %s34, 3
        %s426 = scalar_select %p425, %s34, 3
        %s427 = smul.addr %s426, 4
        %s428 = smul.addr %s427, 8
        %s429 = scalar_lea.vmem %s4, %s428
        %p430 = pneg %p173
        %p431 = pneg %p170
        %p432 = scmp.lt.s32.totalorder %s34, 3
        %s433 = scalar_select %p432, %s34, 3
        %s434 = smul.addr %s433, 4
        %s435 = smul.addr %s434, 8
        %s436 = scalar_lea.vmem %s5, %s435
        %p437 = pneg %p199
        %p438 = pneg %p196
        %p439 = scmp.lt.s32.totalorder %s34, 3
        %s440 = scalar_select %p439, %s34, 3
        %s441 = smul.addr %s440, 8
        %s442 = scalar_lea.vmem %s6, %s441
        %p443 = pneg %p225
        %p444 = pneg %p222
        %p445 = scmp.lt.s32.totalorder %s33, 0
        %s446 = scalar_select %p445, %s33, 0
        %s447 = smul.addr %s446, 8
        %s448 = scalar_lea.vmem %s7, %s447
        %p449 = pneg %p251
        %p450 = pneg %p248
        %p451 = pneg %p279
        %p452 = pneg %p276
        %s453 = sand.u32 %s266, 1
        %s454 = scalar_lea.sflag [#allocation4], %s453
        %s455 = sand.u32 %s266, 1
        %s456 = smul.addr %s455, 8
        %s457 = scalar_lea.vmem [#allocation3], %s456
        %p458 = pneg %p309
        %p459 = pneg %p306
        %s460 = sand.u32 %s296, 1
        %s461 = scalar_lea.sflag [#allocation6], %s460
        %s462 = sand.u32 %s296, 1
        %s463 = smul.addr %s462, 8
        %s464 = scalar_lea.vmem [#allocation5], %s463
        %p465 = scmp.lt.s32.totalorder %s32, 1
        %s466 = scalar_select %p465, %s32, 1
        %p467 = scmp.lt.s32.totalorder %s33, 0
        %s468 = scalar_select %p467, %s33, 0
        %s469 = sadd.s32 %s468, %s466
        %s470 = smul.addr %s469, 8
        %s471 = scalar_lea.vmem %s0, %s470
        %p472 = scmp.lt.s32.totalorder %s32, 1
        %s473 = scalar_select %p472, %s32, 1
        %s474 = smul.addr %s473, 8
        %s475 = scalar_lea.vmem %s1, %s474
        %p476 = scmp.lt.s32.totalorder %s32, 1
        %s477 = scalar_select %p476, %s32, 1
        %s478 = smul.addr %s477, 8
        %s479 = scalar_lea.vmem %s2, %s478
        %p480 = scmp.lt.s32.totalorder %s34, 3
        %s481 = scalar_select %p480, %s34, 3
        %s482 = smul.addr %s481, 4
        %s483 = smul.addr %s482, 8
        %s484 = scalar_lea.vmem %s3, %s483
        %p485 = scmp.lt.s32.totalorder %s34, 3
        %s486 = scalar_select %p485, %s34, 3
        %s487 = smul.addr %s486, 4
        %s488 = smul.addr %s487, 8
        %s489 = scalar_lea.vmem %s4, %s488
        %p490 = scmp.lt.s32.totalorder %s34, 3
        %s491 = scalar_select %p490, %s34, 3
        %s492 = smul.addr %s491, 4
        %s493 = smul.addr %s492, 8
        %s494 = scalar_lea.vmem %s5, %s493
        %p495 = scmp.lt.s32.totalorder %s34, 3
        %s496 = scalar_select %p495, %s34, 3
        %s497 = smul.addr %s496, 8
        %s498 = scalar_lea.vmem %s6, %s497
        %p499 = scmp.lt.s32.totalorder %s33, 0
        %s500 = scalar_select %p499, %s33, 0
        %s501 = smul.addr %s500, 8
        %s502 = scalar_lea.vmem %s7, %s501
        %p503 = scmp.eq.s32.totalorder %s34, 0
        // Predicated region
        $region53: #{tpu_custom_call.1} parent=51 // pred_check
          %p504 = pneg %p503
        $region54: #{tpu_custom_call.1} parent=51 // pred_check_branch
          %506 = sbr.rel (%p504) target = $region56
        $region55: #{tpu_custom_call.1} parent=51 // pred_region
          %vm507 = vcmask 261120
          %508 = vst.msk [vmem:[#allocation2] sm:$0xff] %vm507, 0.0
        $region56: #{tpu_custom_call.1} parent=51 // pred_fallthru
          _
        %v509 = vld [vmem:[%s471] sm:$0xff]
        %v510 = vld [vmem:[%s484] sm:$0xff]
        %v511 = vld [vmem:[%s484 + $0x8] sm:$0xff]
        %v512 = vld [vmem:[%s484 + $0x10] sm:$0xff]
        %v513 = vld [vmem:[%s484 + $0x18] sm:$0xff]
        %vm514 = vcmask 261120
        %v516 = vsel %vm514, %v509, 0
        %518 = vmatprep.subr.mxu0 0.0
        %519 = vmatpush1.msra.mxu0 0.0
        %520 = vmatprep.subr.mxu0 0.0
        %521 = vmatpush1.msra.mxu0 0.0
        %522 = vmatprep.subr.mxu0 0.0
        %523 = vmatpush1.msra.mxu0 0.0
        %524 = vmatprep.subr.mxu0 0.0
        %525 = vmatpush1.msra.mxu0 0.0
        %526 = vmatprep.subr.mxu0 0.0
        %527 = vmatpush1.msra.mxu0 0.0
        %528 = vmatprep.subr.mxu0 0.0
        %529 = vmatpush1.msra.mxu0 0.0
        %530 = vmatprep.subr.mxu0 0.0
        %531 = vmatpush1.msra.mxu0 0.0
        %532 = vmatprep.subr.mxu0 0.0
        %533 = vmatpush1.msra.mxu0 0.0
        %534 = vmatprep.subr.mxu0 0.0
        %535 = vmatpush1.msra.mxu0 0.0
        %536 = vmatprep.subr.mxu0 0.0
        %537 = vmatpush1.msra.mxu0 0.0
        %538 = vmatprep.subr.mxu0 0.0
        %539 = vmatpush1.msra.mxu0 0.0
        %540 = vmatprep.subr.mxu0 0.0
        %541 = vmatpush1.msra.mxu0 0.0
        %542 = vmatprep.subr.mxu0 0.0
        %543 = vmatpush1.msra.mxu0 %v513
        %544 = vmatprep.subr.mxu0 0.0
        %545 = vmatpush1.msra.mxu0 %v512
        %546 = vmatprep.subr.mxu0 0.0
        %547 = vmatpush1.msra.mxu0 %v511
        %548 = vmatprep.subr.mxu0 0.0
        %549 = vmatpush1.msra.mxu0 %v510
        %550 = vmatprep.subr.mxu0 0.0
        %551 = vmatpush2.msra.mxu0 0.0
        %552 = vmatprep.subr.mxu0 0.0
        %553 = vmatpush2.msra.mxu0 0.0
        %554 = vmatprep.subr.mxu0 0.0
        %555 = vmatpush2.msra.mxu0 0.0
        %556 = vmatprep.subr.mxu0 0.0
        %557 = vmatpush2.msra.mxu0 0.0
        %558 = vmatprep.subr.mxu0 0.0
        %559 = vmatpush2.msra.mxu0 0.0
        %560 = vmatprep.subr.mxu0 0.0
        %561 = vmatpush2.msra.mxu0 0.0
        %562 = vmatprep.subr.mxu0 0.0
        %563 = vmatpush2.msra.mxu0 0.0
        %564 = vmatprep.subr.mxu0 0.0
        %565 = vmatpush2.msra.mxu0 0.0
        %566 = vmatprep.subr.mxu0 0.0
        %567 = vmatpush2.msra.mxu0 0.0
        %568 = vmatprep.subr.mxu0 0.0
        %569 = vmatpush2.msra.mxu0 0.0
        %570 = vmatprep.subr.mxu0 0.0
        %571 = vmatpush2.msra.mxu0 0.0
        %572 = vmatprep.subr.mxu0 0.0
        %573 = vmatpush2.msra.mxu0 0.0
        %574 = vmatprep.subr.mxu0 0.0
        %575 = vmatpush2.msra.mxu0 0.0
        %576 = vmatprep.subr.mxu0 0.0
        %577 = vmatpush2.msra.mxu0 0.0
        %578 = vmatprep.subr.mxu0 0.0
        %579 = vmatpush2.msra.mxu0 0.0
        %580 = vmatprep.subr.mxu0 0.0
        %581 = vmatpush2.msra.mxu0 0.0
        %582 = vmatprep.mubr.f32.mxu0 0.0
        %583 = vmatmul.mubr.f32.gmra.mxu0 %v516
        %v584 = vpop.f32.mrf.mxu0
        %v585 = vadd.f32 0.0, %v584
        %v586 = vpop.f32.mrf.mxu0
        %587 = vdwg.mxu0
        %v588 = vmul.f32 %v585, 0.35355338
        %v589 = vld [vmem:[%s475] sm:$0xff]
        %v590 = vld [vmem:[%s489] sm:$0xff]
        %v591 = vld [vmem:[%s489 + $0x8] sm:$0xff]
        %v592 = vld [vmem:[%s489 + $0x10] sm:$0xff]
        %v593 = vld [vmem:[%s489 + $0x18] sm:$0xff]
        %v595 = vsel %vm514, %v589, 0
        %597 = vmatprep.subr.mxu0 0.0
        %598 = vmatpush1.msra.mxu0 0.0
        %599 = vmatprep.subr.mxu0 0.0
        %600 = vmatpush1.msra.mxu0 0.0
        %601 = vmatprep.subr.mxu0 0.0
        %602 = vmatpush1.msra.mxu0 0.0
        %603 = vmatprep.subr.mxu0 0.0
        %604 = vmatpush1.msra.mxu0 0.0
        %605 = vmatprep.subr.mxu0 0.0
        %606 = vmatpush1.msra.mxu0 0.0
        %607 = vmatprep.subr.mxu0 0.0
        %608 = vmatpush1.msra.mxu0 0.0
        %609 = vmatprep.subr.mxu0 0.0
        %610 = vmatpush1.msra.mxu0 0.0
        %611 = vmatprep.subr.mxu0 0.0
        %612 = vmatpush1.msra.mxu0 0.0
        %613 = vmatprep.subr.mxu0 0.0
        %614 = vmatpush1.msra.mxu0 0.0
        %615 = vmatprep.subr.mxu0 0.0
        %616 = vmatpush1.msra.mxu0 0.0
        %617 = vmatprep.subr.mxu0 0.0
        %618 = vmatpush1.msra.mxu0 0.0
        %619 = vmatprep.subr.mxu0 0.0
        %620 = vmatpush1.msra.mxu0 0.0
        %621 = vmatprep.subr.mxu0 0.0
        %622 = vmatpush1.msra.mxu0 %v593
        %623 = vmatprep.subr.mxu0 0.0
        %624 = vmatpush1.msra.mxu0 %v592
        %625 = vmatprep.subr.mxu0 0.0
        %626 = vmatpush1.msra.mxu0 %v591
        %627 = vmatprep.subr.mxu0 0.0
        %628 = vmatpush1.msra.mxu0 %v590
        %629 = vmatprep.subr.mxu0 0.0
        %630 = vmatpush2.msra.mxu0 0.0
        %631 = vmatprep.subr.mxu0 0.0
        %632 = vmatpush2.msra.mxu0 0.0
        %633 = vmatprep.subr.mxu0 0.0
        %634 = vmatpush2.msra.mxu0 0.0
        %635 = vmatprep.subr.mxu0 0.0
        %636 = vmatpush2.msra.mxu0 0.0
        %637 = vmatprep.subr.mxu0 0.0
        %638 = vmatpush2.msra.mxu0 0.0
        %639 = vmatprep.subr.mxu0 0.0
        %640 = vmatpush2.msra.mxu0 0.0
        %641 = vmatprep.subr.mxu0 0.0
        %642 = vmatpush2.msra.mxu0 0.0
        %643 = vmatprep.subr.mxu0 0.0
        %644 = vmatpush2.msra.mxu0 0.0
        %645 = vmatprep.subr.mxu0 0.0
        %646 = vmatpush2.msra.mxu0 0.0
        %647 = vmatprep.subr.mxu0 0.0
        %648 = vmatpush2.msra.mxu0 0.0
        %649 = vmatprep.subr.mxu0 0.0
        %650 = vmatpush2.msra.mxu0 0.0
        %651 = vmatprep.subr.mxu0 0.0
        %652 = vmatpush2.msra.mxu0 0.0
        %653 = vmatprep.subr.mxu0 0.0
        %654 = vmatpush2.msra.mxu0 0.0
        %655 = vmatprep.subr.mxu0 0.0
        %656 = vmatpush2.msra.mxu0 0.0
        %657 = vmatprep.subr.mxu0 0.0
        %658 = vmatpush2.msra.mxu0 0.0
        %659 = vmatprep.subr.mxu0 0.0
        %660 = vmatpush2.msra.mxu0 0.0
        %661 = vmatprep.mubr.f32.mxu0 0.0
        %662 = vmatmul.mubr.f32.gmra.mxu0 %v595
        %v663 = vpop.f32.mrf.mxu0
        %v664 = vadd.f32 0.0, %v663
        %v665 = vpop.f32.mrf.mxu0
        %666 = vdwg.mxu0
        %v667 = vld [vmem:[%s479] sm:$0xff]
        %v668 = vld [vmem:[%s494] sm:$0xff]
        %v669 = vld [vmem:[%s494 + $0x8] sm:$0xff]
        %v670 = vld [vmem:[%s494 + $0x10] sm:$0xff]
        %v671 = vld [vmem:[%s494 + $0x18] sm:$0xff]
        %v673 = vsel %vm514, %v667, 0
        %675 = vmatprep.subr.mxu0 0.0
        %676 = vmatpush1.msra.mxu0 0.0
        %677 = vmatprep.subr.mxu0 0.0
        %678 = vmatpush1.msra.mxu0 0.0
        %679 = vmatprep.subr.mxu0 0.0
        %680 = vmatpush1.msra.mxu0 0.0
        %681 = vmatprep.subr.mxu0 0.0
        %682 = vmatpush1.msra.mxu0 0.0
        %683 = vmatprep.subr.mxu0 0.0
        %684 = vmatpush1.msra.mxu0 0.0
        %685 = vmatprep.subr.mxu0 0.0
        %686 = vmatpush1.msra.mxu0 0.0
        %687 = vmatprep.subr.mxu0 0.0
        %688 = vmatpush1.msra.mxu0 0.0
        %689 = vmatprep.subr.mxu0 0.0
        %690 = vmatpush1.msra.mxu0 0.0
        %691 = vmatprep.subr.mxu0 0.0
        %692 = vmatpush1.msra.mxu0 0.0
        %693 = vmatprep.subr.mxu0 0.0
        %694 = vmatpush1.msra.mxu0 0.0
        %695 = vmatprep.subr.mxu0 0.0
        %696 = vmatpush1.msra.mxu0 0.0
        %697 = vmatprep.subr.mxu0 0.0
        %698 = vmatpush1.msra.mxu0 0.0
        %699 = vmatprep.subr.mxu0 0.0
        %700 = vmatpush1.msra.mxu0 %v671
        %701 = vmatprep.subr.mxu0 0.0
        %702 = vmatpush1.msra.mxu0 %v670
        %703 = vmatprep.subr.mxu0 0.0
        %704 = vmatpush1.msra.mxu0 %v669
        %705 = vmatprep.subr.mxu0 0.0
        %706 = vmatpush1.msra.mxu0 %v668
        %707 = vmatprep.subr.mxu0 0.0
        %708 = vmatpush2.msra.mxu0 0.0
        %709 = vmatprep.subr.mxu0 0.0
        %710 = vmatpush2.msra.mxu0 0.0
        %711 = vmatprep.subr.mxu0 0.0
        %712 = vmatpush2.msra.mxu0 0.0
        %713 = vmatprep.subr.mxu0 0.0
        %714 = vmatpush2.msra.mxu0 0.0
        %715 = vmatprep.subr.mxu0 0.0
        %716 = vmatpush2.msra.mxu0 0.0
        %717 = vmatprep.subr.mxu0 0.0
        %718 = vmatpush2.msra.mxu0 0.0
        %719 = vmatprep.subr.mxu0 0.0
        %720 = vmatpush2.msra.mxu0 0.0
        %721 = vmatprep.subr.mxu0 0.0
        %722 = vmatpush2.msra.mxu0 0.0
        %723 = vmatprep.subr.mxu0 0.0
        %724 = vmatpush2.msra.mxu0 0.0
        %725 = vmatprep.subr.mxu0 0.0
        %726 = vmatpush2.msra.mxu0 0.0
        %727 = vmatprep.subr.mxu0 0.0
        %728 = vmatpush2.msra.mxu0 0.0
        %729 = vmatprep.subr.mxu0 0.0
        %730 = vmatpush2.msra.mxu0 0.0
        %731 = vmatprep.subr.mxu0 0.0
        %732 = vmatpush2.msra.mxu0 0.0
        %733 = vmatprep.subr.mxu0 0.0
        %734 = vmatpush2.msra.mxu0 0.0
        %735 = vmatprep.subr.mxu0 0.0
        %736 = vmatpush2.msra.mxu0 0.0
        %737 = vmatprep.subr.mxu0 0.0
        %738 = vmatpush2.msra.mxu0 0.0
        %739 = vmatprep.mubr.f32.mxu0 0.0
        %740 = vmatmul.mubr.f32.gmra.mxu0 %v673
        %v741 = vpop.f32.mrf.mxu0
        %v742 = vadd.f32 0.0, %v741
        %v743 = vpop.f32.mrf.mxu0
        %744 = vdwg.mxu0
        %v745 = vld [vmem:[%s502] sm:$0xff]
        %vm746 = vcmask 64512
        %v748 = vsel %vm746, %v588, 0
        %v751 = vsel %vm746, %v664, 0
        %753 = vmatprep.subr.mxu0 0.0
        %754 = vmatpush1.xpose.msra.mxu0 0.0
        %755 = vmatprep.subr.mxu0 0.0
        %756 = vmatpush1.xpose.msra.mxu0 0.0
        %757 = vmatprep.subr.mxu0 0.0
        %758 = vmatpush1.xpose.msra.mxu0 0.0
        %759 = vmatprep.subr.mxu0 0.0
        %760 = vmatpush1.xpose.msra.mxu0 0.0
        %761 = vmatprep.subr.mxu0 0.0
        %762 = vmatpush1.xpose.msra.mxu0 0.0
        %763 = vmatprep.subr.mxu0 0.0
        %764 = vmatpush1.xpose.msra.mxu0 0.0
        %765 = vmatprep.subr.mxu0 0.0
        %766 = vmatpush1.xpose.msra.mxu0 0.0
        %767 = vmatprep.subr.mxu0 0.0
        %768 = vmatpush1.xpose.msra.mxu0 0.0
        %769 = vmatprep.subr.mxu0 0.0
        %770 = vmatpush1.xpose.msra.mxu0 0.0
        %771 = vmatprep.subr.mxu0 0.0
        %772 = vmatpush1.xpose.msra.mxu0 0.0
        %773 = vmatprep.subr.mxu0 0.0
        %774 = vmatpush1.xpose.msra.mxu0 0.0
        %775 = vmatprep.subr.mxu0 0.0
        %776 = vmatpush1.xpose.msra.mxu0 0.0
        %777 = vmatprep.subr.mxu0 0.0
        %778 = vmatpush1.xpose.msra.mxu0 0.0
        %779 = vmatprep.subr.mxu0 0.0
        %780 = vmatpush1.xpose.msra.mxu0 0.0
        %781 = vmatprep.subr.mxu0 0.0
        %782 = vmatpush1.xpose.msra.mxu0 0.0
        %783 = vmatprep.subr.mxu0 0.0
        %784 = vmatpush1.xpose.msra.mxu0 %v751
        %785 = vmatprep.subr.mxu0 0.0
        %786 = vmatpush2.xpose.msra.mxu0 0.0
        %787 = vmatprep.subr.mxu0 0.0
        %788 = vmatpush2.xpose.msra.mxu0 0.0
        %789 = vmatprep.subr.mxu0 0.0
        %790 = vmatpush2.xpose.msra.mxu0 0.0
        %791 = vmatprep.subr.mxu0 0.0
        %792 = vmatpush2.xpose.msra.mxu0 0.0
        %793 = vmatprep.subr.mxu0 0.0
        %794 = vmatpush2.xpose.msra.mxu0 0.0
        %795 = vmatprep.subr.mxu0 0.0
        %796 = vmatpush2.xpose.msra.mxu0 0.0
        %797 = vmatprep.subr.mxu0 0.0
        %798 = vmatpush2.xpose.msra.mxu0 0.0
        %799 = vmatprep.subr.mxu0 0.0
        %800 = vmatpush2.xpose.msra.mxu0 0.0
        %801 = vmatprep.subr.mxu0 0.0
        %802 = vmatpush2.xpose.msra.mxu0 0.0
        %803 = vmatprep.subr.mxu0 0.0
        %804 = vmatpush2.xpose.msra.mxu0 0.0
        %805 = vmatprep.subr.mxu0 0.0
        %806 = vmatpush2.xpose.msra.mxu0 0.0
        %807 = vmatprep.subr.mxu0 0.0
        %808 = vmatpush2.xpose.msra.mxu0 0.0
        %809 = vmatprep.subr.mxu0 0.0
        %810 = vmatpush2.xpose.msra.mxu0 0.0
        %811 = vmatprep.subr.mxu0 0.0
        %812 = vmatpush2.xpose.msra.mxu0 0.0
        %813 = vmatprep.subr.mxu0 0.0
        %814 = vmatpush2.xpose.msra.mxu0 0.0
        %815 = vmatprep.subr.mxu0 0.0
        %816 = vmatpush2.xpose.msra.mxu0 0.0
        %817 = vmatprep.mubr.f32.mxu0 0.0
        %818 = vmatmul.mubr.f32.gmra.mxu0 %v748
        %v819 = vpop.f32.mrf.mxu0
        %v820 = vadd.f32 %v745, %v819
        %v821 = vpop.f32.mrf.mxu0
        %822 = vdwg.mxu0
        %v823 = vsel %vm746, %v820, -inf
        %824 = vmax.xlane.f32.xlu0 %v823
        %v825 = vpop.xlane.xlu0 %824
        %v826 = vsub.f32 %v820, %v825
        %v827 = vmul.f32 %v826, 1.442695
        %v828 = vpow.pop %v827
        %v829 = vsel %vm746, %v828, 0.0
        %830 = vadd.xlane.f32.xlu0 %v829
        %v831 = vpop.xlane.xlu0 %830
        %v832 = vrcp.pop %v831
        %v833 = vmul.f32 %v828, %v832
        %834 = vst.msk [vmem:[%s464] sm:$0xff] %vm746, %v833
        %v836 = vsel %vm746, %v833, 0
        %838 = vmatprep.subr.mxu0 0.0
        %839 = vmatpush1.msra.mxu0 0.0
        %840 = vmatprep.subr.mxu0 0.0
        %841 = vmatpush1.msra.mxu0 0.0
        %842 = vmatprep.subr.mxu0 0.0
        %843 = vmatpush1.msra.mxu0 0.0
        %844 = vmatprep.subr.mxu0 0.0
        %845 = vmatpush1.msra.mxu0 0.0
        %846 = vmatprep.subr.mxu0 0.0
        %847 = vmatpush1.msra.mxu0 0.0
        %848 = vmatprep.subr.mxu0 0.0
        %849 = vmatpush1.msra.mxu0 0.0
        %850 = vmatprep.subr.mxu0 0.0
        %851 = vmatpush1.msra.mxu0 0.0
        %852 = vmatprep.subr.mxu0 0.0
        %853 = vmatpush1.msra.mxu0 0.0
        %854 = vmatprep.subr.mxu0 0.0
        %855 = vmatpush1.msra.mxu0 0.0
        %856 = vmatprep.subr.mxu0 0.0
        %857 = vmatpush1.msra.mxu0 0.0
        %858 = vmatprep.subr.mxu0 0.0
        %859 = vmatpush1.msra.mxu0 0.0
        %860 = vmatprep.subr.mxu0 0.0
        %861 = vmatpush1.msra.mxu0 0.0
        %862 = vmatprep.subr.mxu0 0.0
        %863 = vmatpush1.msra.mxu0 0.0
        %864 = vmatprep.subr.mxu0 0.0
        %865 = vmatpush1.msra.mxu0 0.0
        %866 = vmatprep.subr.mxu0 0.0
        %867 = vmatpush1.msra.mxu0 0.0
        %868 = vmatprep.subr.mxu0 0.0
        %869 = vmatpush1.msra.mxu0 %v742
        %870 = vmatprep.subr.mxu0 0.0
        %871 = vmatpush2.msra.mxu0 0.0
        %872 = vmatprep.subr.mxu0 0.0
        %873 = vmatpush2.msra.mxu0 0.0
        %874 = vmatprep.subr.mxu0 0.0
        %875 = vmatpush2.msra.mxu0 0.0
        %876 = vmatprep.subr.mxu0 0.0
        %877 = vmatpush2.msra.mxu0 0.0
        %878 = vmatprep.subr.mxu0 0.0
        %879 = vmatpush2.msra.mxu0 0.0
        %880 = vmatprep.subr.mxu0 0.0
        %881 = vmatpush2.msra.mxu0 0.0
        %882 = vmatprep.subr.mxu0 0.0
        %883 = vmatpush2.msra.mxu0 0.0
        %884 = vmatprep.subr.mxu0 0.0
        %885 = vmatpush2.msra.mxu0 0.0
        %886 = vmatprep.subr.mxu0 0.0
        %887 = vmatpush2.msra.mxu0 0.0
        %888 = vmatprep.subr.mxu0 0.0
        %889 = vmatpush2.msra.mxu0 0.0
        %890 = vmatprep.subr.mxu0 0.0
        %891 = vmatpush2.msra.mxu0 0.0
        %892 = vmatprep.subr.mxu0 0.0
        %893 = vmatpush2.msra.mxu0 0.0
        %894 = vmatprep.subr.mxu0 0.0
        %895 = vmatpush2.msra.mxu0 0.0
        %896 = vmatprep.subr.mxu0 0.0
        %897 = vmatpush2.msra.mxu0 0.0
        %898 = vmatprep.subr.mxu0 0.0
        %899 = vmatpush2.msra.mxu0 0.0
        %900 = vmatprep.subr.mxu0 0.0
        %901 = vmatpush2.msra.mxu0 0.0
        %902 = vmatprep.mubr.f32.mxu0 0.0
        %903 = vmatmul.mubr.f32.gmra.mxu0 %v836
        %v904 = vpop.f32.mrf.mxu0
        %v905 = vadd.f32 0.0, %v904
        %v906 = vpop.f32.mrf.mxu0
        %907 = vdwg.mxu0
        %v908 = vld [vmem:[#allocation2] sm:$0xff]
        %v909 = vld [vmem:[%s498] sm:$0xff]
        %v911 = vsel %vm746, %v905, 0
        %913 = vmatprep.subr.mxu0 0.0
        %914 = vmatpush1.msra.mxu0 0.0
        %915 = vmatprep.subr.mxu0 0.0
        %916 = vmatpush1.msra.mxu0 0.0
        %917 = vmatprep.subr.mxu0 0.0
        %918 = vmatpush1.msra.mxu0 0.0
        %919 = vmatprep.subr.mxu0 0.0
        %920 = vmatpush1.msra.mxu0 0.0
        %921 = vmatprep.subr.mxu0 0.0
        %922 = vmatpush1.msra.mxu0 0.0
        %923 = vmatprep.subr.mxu0 0.0
        %924 = vmatpush1.msra.mxu0 0.0
        %925 = vmatprep.subr.mxu0 0.0
        %926 = vmatpush1.msra.mxu0 0.0
        %927 = vmatprep.subr.mxu0 0.0
        %928 = vmatpush1.msra.mxu0 0.0
        %929 = vmatprep.subr.mxu0 0.0
        %930 = vmatpush1.msra.mxu0 0.0
        %931 = vmatprep.subr.mxu0 0.0
        %932 = vmatpush1.msra.mxu0 0.0
        %933 = vmatprep.subr.mxu0 0.0
        %934 = vmatpush1.msra.mxu0 0.0
        %935 = vmatprep.subr.mxu0 0.0
        %936 = vmatpush1.msra.mxu0 0.0
        %937 = vmatprep.subr.mxu0 0.0
        %938 = vmatpush1.msra.mxu0 0.0
        %939 = vmatprep.subr.mxu0 0.0
        %940 = vmatpush1.msra.mxu0 0.0
        %941 = vmatprep.subr.mxu0 0.0
        %942 = vmatpush1.msra.mxu0 0.0
        %943 = vmatprep.subr.mxu0 0.0
        %944 = vmatpush1.msra.mxu0 %v909
        %945 = vmatprep.subr.mxu0 0.0
        %946 = vmatpush2.msra.mxu0 0.0
        %947 = vmatprep.subr.mxu0 0.0
        %948 = vmatpush2.msra.mxu0 0.0
        %949 = vmatprep.subr.mxu0 0.0
        %950 = vmatpush2.msra.mxu0 0.0
        %951 = vmatprep.subr.mxu0 0.0
        %952 = vmatpush2.msra.mxu0 0.0
        %953 = vmatprep.subr.mxu0 0.0
        %954 = vmatpush2.msra.mxu0 0.0
        %955 = vmatprep.subr.mxu0 0.0
        %956 = vmatpush2.msra.mxu0 0.0
        %957 = vmatprep.subr.mxu0 0.0
        %958 = vmatpush2.msra.mxu0 0.0
        %959 = vmatprep.subr.mxu0 0.0
        %960 = vmatpush2.msra.mxu0 0.0
        %961 = vmatprep.subr.mxu0 0.0
        %962 = vmatpush2.msra.mxu0 0.0
        %963 = vmatprep.subr.mxu0 0.0
        %964 = vmatpush2.msra.mxu0 0.0
        %965 = vmatprep.subr.mxu0 0.0
        %966 = vmatpush2.msra.mxu0 0.0
        %967 = vmatprep.subr.mxu0 0.0
        %968 = vmatpush2.msra.mxu0 0.0
        %969 = vmatprep.subr.mxu0 0.0
        %970 = vmatpush2.msra.mxu0 0.0
        %971 = vmatprep.subr.mxu0 0.0
        %972 = vmatpush2.msra.mxu0 0.0
        %973 = vmatprep.subr.mxu0 0.0
        %974 = vmatpush2.msra.mxu0 0.0
        %975 = vmatprep.subr.mxu0 0.0
        %976 = vmatpush2.msra.mxu0 0.0
        %977 = vmatprep.mubr.f32.mxu0 0.0
        %978 = vmatmul.mubr.f32.gmra.mxu0 %v911
        %v979 = vpop.f32.mrf.mxu0
        %v980 = vadd.f32 0.0, %v979
        %v981 = vpop.f32.mrf.mxu0
        %982 = vdwg.mxu0
        %v983 = vadd.f32 %v908, %v980
        %984 = vst.msk [vmem:[#allocation2] sm:$0xff] %vm514, %v983
        %p985 = scmp.eq.s32.totalorder %s34, 3
        // Predicated region
        $region57: #{tpu_custom_call.1} parent=51 // pred_check
          %p986 = pneg %p985
        $region58: #{tpu_custom_call.1} parent=51 // pred_check_branch
          %988 = sbr.rel (%p986) target = $region60
        $region59: #{tpu_custom_call.1} parent=51 // pred_region
          %v989 = vld [vmem:[#allocation2] sm:$0xff]
          %990 = vst.msk [vmem:[%s457] sm:$0xff] %vm514, %v989
        $region60: #{tpu_custom_call.1} parent=51 // pred_fallthru
          _
        %s991 = sand.u32 %s266, 1
        %s992 = scalar_lea.sflag [#allocation4], %s991
        %s993 = sand.u32 %s266, 1
        %s994 = smul.addr %s993, 8
        %s995 = scalar_lea.vmem [#allocation3], %s994
        %s996 = sand.u32 %s296, 1
        %s997 = scalar_lea.sflag [#allocation6], %s996
        %s998 = sand.u32 %s296, 1
        %s999 = smul.addr %s998, 8
        %s1000 = scalar_lea.vmem [#allocation5], %s999
        // Predicated region
        $region61: #{tpu_custom_call.1} parent=51 // pred_check
          %p1001 = pneg %p276
        $region62: #{tpu_custom_call.1} parent=51 // pred_check_branch
          %1003 = sbr.rel (%p1001) target = $region64
        $region63: #{tpu_custom_call.1} parent=51 // pred_region
          %s1005 = ssub.s32 128, 128
          %1006 = vsyncadd %s992, %s1005
          %s1007 = sadd.s32 %s33, %s32
          %s1008 = smul.addr %s1007, 128
          %s1009 = scalar_lea.hbm %s8, %s1008
          %s1011 = sshll.u32 %s995, 4
          %s1012 = int_to_ptr.vmem [resolvable:$true] %s1011
          %1014 = dma.vmem_to_hbm [thread:$0]  %s1012, 128, %s1009, %s992
        $region64: #{tpu_custom_call.1} parent=51 // pred_fallthru
          _
        // Predicated region
        $region65: #{tpu_custom_call.1} parent=51 // pred_check
          %p1015 = pneg %p306
        $region66: #{tpu_custom_call.1} parent=51 // pred_check_branch
          %1017 = sbr.rel (%p1015) target = $region68
        $region67: #{tpu_custom_call.1} parent=51 // pred_region
          %s1019 = ssub.s32 128, 128
          %1020 = vsyncadd %s997, %s1019
          %s1021 = sadd.s32 %s33, %s34
          %s1022 = smul.addr %s32, 4
          %s1023 = sadd.s32 %s1021, %s1022
          %s1024 = smul.addr %s1023, 128
          %s1025 = scalar_lea.hbm %s9, %s1024
          %s1027 = sshll.u32 %s1000, 4
          %s1028 = int_to_ptr.vmem [resolvable:$true] %s1027
          %1030 = dma.vmem_to_hbm [thread:$0]  %s1028, 128, %s1025, %s997
        $region68: #{tpu_custom_call.1} parent=51 // pred_fallthru
          _
      $region52: #{tpu_custom_call.1} parent=5 // pred_fallthru
        _
      %p1031 = scmp.le.s32.totalorder 2, %s22
      // Predicated region
      $region69: #{tpu_custom_call.1} parent=5 // pred_check
        %p1032 = pneg %p1031
      $region70: #{tpu_custom_call.1} parent=5 // pred_check_branch
        %1034 = sbr.rel (%p1032) target = $region72
      $region71: #{tpu_custom_call.1} parent=5 // pred_region
        %s1035 = ssub.s32 %s22, 2
        // Predicated region
        $region73: #{tpu_custom_call.1} parent=71 // pred_check
          %p1036 = pneg %p282
        $region74: #{tpu_custom_call.1} parent=71 // pred_check_branch
          %1038 = sbr.rel (%p1036) target = $region76
        $region75: #{tpu_custom_call.1} parent=71 // pred_region
          %s1039 = sand.u32 %s267, 1
          %s1040 = scalar_lea.sflag [#allocation4], %s1039
          %s1041 = sand.u32 %s267, 1
          %s1042 = smul.addr %s1041, 8
          %s1043 = scalar_lea.vmem [#allocation3], %s1042
          %1044 = dma.done %s1040, 128
        $region76: #{tpu_custom_call.1} parent=71 // pred_fallthru
          _
        // Predicated region
        $region77: #{tpu_custom_call.1} parent=71 // pred_check
          %p1045 = pneg %p312
        $region78: #{tpu_custom_call.1} parent=71 // pred_check_branch
          %1047 = sbr.rel (%p1045) target = $region80
        $region79: #{tpu_custom_call.1} parent=71 // pred_region
          %s1048 = sand.u32 %s297, 1
          %s1049 = scalar_lea.sflag [#allocation6], %s1048
          %s1050 = sand.u32 %s297, 1
          %s1051 = smul.addr %s1050, 8
          %s1052 = scalar_lea.vmem [#allocation5], %s1051
          %1053 = dma.done %s1049, 128
        $region80: #{tpu_custom_call.1} parent=71 // pred_fallthru
          _
      $region72: #{tpu_custom_call.1} parent=5 // pred_fallthru
        _
    $region6: #{tpu_custom_call.1} parent=1 // loop_footer
      %s26 = sadd.s32 1, %s22
    $region7: #{tpu_custom_call.1} parent=1 // loop_footer_branch
      %21 = sbr.rel target = $region3
    $region8: #{tpu_custom_call.1} parent=1 // loop_exit
      _
    %1054 = vsyncpa [#allocation4], 1
    %s1055 = scalar_lea.sflag [#allocation4], 1
    %1056 = vsyncpa %s1055, 1
    %1057 = vsyncpa [#allocation6], 1
    %s1058 = scalar_lea.sflag [#allocation6], 1
    %1059 = vsyncpa %s1058, 1

</llo_original>
